<compile_context>
chip_gen: v7x
topology: tpu7x:2x2x1
jax: 0.10.0
libtpu: 0.0.40
codegen_flags: <defaults>
</compile_context>

<pallas_src>
import numpy as np
import jax
import jax.numpy as jnp
from jax import lax
from jax.experimental import pallas as pl
from jax.experimental.pallas import tpu as pltpu


# ------------------------------- Pallas wrapper -------------------------------
def normalizing_flow_forward(z, flow_params, *, block_b=None, input_dtype=None):
    """Pallas TPU forward of NormalizingFlow(K, D).

    Args:
      z:            [B, D]        float32 latents.
      flow_params:  [K, B, 1+2D]  float32; flow_params[i] = per-row (b | w | u).
      block_b:      batch tile size (lane columns). Default: lane-dense policy below.
      input_dtype:  optional narrower dtype (e.g. jnp.bfloat16) for the kernel
                    inputs; compute stays float32 inside the kernel.

    Returns:
      (z_K [B, D], sum_ladj [B, 1, 1]) -- same values/shapes as the PyTorch module.
    """
    B, D = z.shape
    K, Bp, P = flow_params.shape
    assert Bp == B and P == 1 + 2 * D, "flow_params must be [K, B, 1+2D]"

    # ---- batch tile selection (lane axis) ------------------------------------
    # Small batches: one full-extent tile (full-dim block sizes are always legal).
    # Larger batches: multiples of 128 lanes, >= 2 tiles so v7x's two TensorCores
    # both get work, capped at 16384 columns (~5.6 MB/tile at D=8,K=4 -> ~11 MB
    # double-buffered, comfortably inside the 48 MiB scoped-VMEM limit below and
    # inside v7x's 64 MiB physical VMEM).
    MAX_TILE = 16384
    if block_b is None:
        if B <= 256:
            block_b = B
        else:
            half = ((-(-B // 2)) + 127) // 128 * 128   # round_up(cdiv(B,2), 128)
            block_b = min(half, MAX_TILE)
    grid = (pl.cdiv(B, block_b),)

    # ---- lane-major layouts ----------------------------------------------------
    # TODO(synk): if the producer/consumer can work directly in [D, B] / [K, P, B]
    # layouts, these wrapper transposes (extra HBM passes) can be removed.
    zT = jnp.transpose(z)                          # [D, B]
    lamT = jnp.transpose(flow_params, (0, 2, 1))   # [K, P, B]
    if input_dtype is not None:
        zT = zT.astype(input_dtype)
        lamT = lamT.astype(input_dtype)

    def kernel(z_ref, lam_ref, out_ref):
        # z_ref:   [D, TB]     latent tile, batch on lanes
        # lam_ref: [K, P, TB]  packed params; sublane rows = [b | w(D) | u(D)]
        # out_ref: [D+1, TB]   rows 0..D-1 = z_K, row D = sum log|det J|
        tb = z_ref.shape[1]
        zk = z_ref[...].astype(jnp.float32)                      # [D, TB]
        sladj = jnp.zeros((1, tb), jnp.float32)                  # [1, TB]

        def step(lam, zk, sladj):
            b = lam[0:1, :]                                      # [1, TB]
            w = lam[1:1 + D, :]                                  # [D, TB]
            u = lam[1 + D:1 + 2 * D, :]                          # [D, TB]
            zw = jnp.sum(zk * w, axis=0, keepdims=True)          # sublane reduce
            t = jnp.tanh(zw + b)                                 # EUP
            zk = zk + u * t                                      # f_z
            wu = jnp.sum(w * u, axis=0, keepdims=True)           # <w, u>
            # <psi, u> = (1 - t^2) * <w, u>
            sladj = sladj + jnp.log(jnp.abs(1.0 + (1.0 - t * t) * wu))
            return zk, sladj

        if K <= 8:
            # Small static K: fully unroll, everything stays in vregs.
            for k in range(K):
                zk, sladj = step(lam_ref[k].astype(jnp.float32), zk, sladj)
        else:
            # Large K: bound live ranges / code size with a visible loop.
            def body(k, carry):
                zk_c, sl_c = carry
                return step(lam_ref[k].astype(jnp.float32), zk_c, sl_c)
            zk, sladj = lax.fori_loop(0, K, body, (zk, sladj))

        # Static ref-slice stores (free views) instead of a lane-axis concat.
        out_ref[:D, :] = zk
        out_ref[D:, :] = sladj

    out = pl.pallas_call(
        kernel,
        out_shape=jax.ShapeDtypeStruct((D + 1, B), jnp.float32),
        grid=grid,
        in_specs=[
            pl.BlockSpec((D, block_b), lambda i: (0, i)),
            pl.BlockSpec((K, P, block_b), lambda i: (0, 0, i)),
        ],
        out_specs=pl.BlockSpec((D + 1, block_b), lambda i: (0, i)),
        compiler_params=pltpu.CompilerParams(
            # Batch tiles are independent -> shard across both TCs on v7x.
            dimension_semantics=("parallel",),
            # Above v5e's 16 MiB scoped default, below v7x's 64 MiB physical VMEM.
            vmem_limit_bytes=48 * 1024 * 1024,
        ),
    )(zT, lamT)

    z_k = jnp.transpose(out[:D, :])            # [B, D]
    sum_ladj = out[D, :].reshape(B, 1, 1)      # torch returns [B, 1, 1]
    return z_k, sum_ladj


# --------------------------- pure-JAX reference (check) ------------------------
def normalizing_flow_ref(z, flow_params):
    K = flow_params.shape[0]
    D = z.shape[1]
    sum_ladj = jnp.zeros((z.shape[0], 1, 1), jnp.float32)
    for i in range(K):
        lam = flow_params[i]
        b = lam[:, :1]
        w = lam[:, 1:1 + D]
        u = lam[:, 1 + D:]
        transf = jnp.tanh(jnp.sum(z * w, axis=1, keepdims=True) + b)
        z = z + u * transf
        psi = (1.0 - transf ** 2) * w
        ladj = jnp.log(jnp.abs(1.0 + jnp.sum(psi * u, axis=1, keepdims=True)))
        sum_ladj = sum_ladj + ladj[:, :, None]
    return z, sum_ladj


# ------------------------------------ main -------------------------------------
if __name__ == "__main__":
    K_FLOWS = 4      # number of planar flows
    D = 8            # latent dimension

    key = jax.random.PRNGKey(0)

    # Small single-tile check (B <= 256 -> one full-extent block).
    B = 8
    kz, kp, key = jax.random.split(key, 3)
    z0 = jax.random.normal(kz, (B, D), dtype=jnp.float32)
    flow_params = 0.5 * jax.random.normal(kp, (K_FLOWS, B, 1 + 2 * D), dtype=jnp.float32)

    z_k, sum_ladj = normalizing_flow_forward(z0, flow_params)
    jax.block_until_ready((z_k, sum_ladj))

    z_ref, ladj_ref = normalizing_flow_ref(z0, flow_params)
    np.testing.assert_allclose(np.asarray(z_k), np.asarray(z_ref), rtol=1e-3, atol=1e-3)
    np.testing.assert_allclose(np.asarray(sum_ladj), np.asarray(ladj_ref), rtol=1e-3, atol=1e-3)

    # Multi-tile check (B = 512 -> block_b = 256, grid = (2,), both TCs on v7x).
    B2 = 512
    kz2, kp2, key = jax.random.split(key, 3)
    z1 = jax.random.normal(kz2, (B2, D), dtype=jnp.float32)
    flow_params2 = 0.5 * jax.random.normal(kp2, (K_FLOWS, B2, 1 + 2 * D), dtype=jnp.float32)

    z_k2, sum_ladj2 = normalizing_flow_forward(z1, flow_params2)
    jax.block_until_ready((z_k2, sum_ladj2))

    z_ref2, ladj_ref2 = normalizing_flow_ref(z1, flow_params2)
    np.testing.assert_allclose(np.asarray(z_k2), np.asarray(z_ref2), rtol=1e-3, atol=1e-3)
    np.testing.assert_allclose(np.asarray(sum_ladj2), np.asarray(ladj_ref2), rtol=1e-3, atol=1e-3)

    print("KERNEL_OK")
</pallas_src>

<mosaic_0001>
module attributes {stable_mosaic.version = 11 : i64} {
  func.func @kernel(%arg0: i32, %arg1: memref<8x8xf32, #tpu.memory_space<vmem>>, %arg2: memref<4x17x8xf32, #tpu.memory_space<vmem>>, %arg3: memref<9x8xf32, #tpu.memory_space<vmem>>) attributes {dimension_semantics = [#tpu.dimension_semantics<parallel>], iteration_bounds = array<i64: 1>, scalar_prefetch = 0 : i64, scratch_operands = 0 : i64, tpu.core_type = #tpu.core_type<tc>, window_params = [{transform_indices = @transform_0, window_bounds = array<i64: 8, 8>}, {transform_indices = @transform_1, window_bounds = array<i64: 4, 17, 8>}, {transform_indices = @transform_2, window_bounds = array<i64: 9, 8>}]} {
    %c0 = arith.constant 0 : index
    %c0_0 = arith.constant 0 : index
    %0 = vector.load %arg1[%c0, %c0_0] : memref<8x8xf32, #tpu.memory_space<vmem>>, vector<8x8xf32>
    %cst = arith.constant 0.000000e+00 : f32
    %1 = vector.broadcast %cst : f32 to vector<1x8xf32>
    %c0_1 = arith.constant 0 : index
    %c0_2 = arith.constant 0 : index
    %c0_3 = arith.constant 0 : index
    %2 = vector.load %arg2[%c0_1, %c0_2, %c0_3] : memref<4x17x8xf32, #tpu.memory_space<vmem>>, vector<1x17x8xf32>
    %3 = vector.shape_cast %2 : vector<1x17x8xf32> to vector<17x8xf32>
    %4 = vector.extract_strided_slice %3 {offsets = [0, 0], sizes = [1, 8], strides = [1, 1]} : vector<17x8xf32> to vector<1x8xf32>
    %5 = vector.extract_strided_slice %3 {offsets = [1, 0], sizes = [8, 8], strides = [1, 1]} : vector<17x8xf32> to vector<8x8xf32>
    %6 = vector.extract_strided_slice %3 {offsets = [9, 0], sizes = [8, 8], strides = [1, 1]} : vector<17x8xf32> to vector<8x8xf32>
    %7 = arith.mulf %0, %5 : vector<8x8xf32>
    %cst_4 = arith.constant dense<0.000000e+00> : vector<8xf32>
    %8 = vector.multi_reduction <add>, %7, %cst_4 [0] : vector<8x8xf32> to vector<8xf32>
    %9 = vector.shape_cast %8 : vector<8xf32> to vector<1x8xf32>
    %10 = arith.addf %9, %4 : vector<1x8xf32>
    %11 = math.tanh %10 : vector<1x8xf32>
    %12 = vector.broadcast %11 : vector<1x8xf32> to vector<8x8xf32>
    %13 = arith.mulf %6, %12 : vector<8x8xf32>
    %14 = arith.addf %0, %13 : vector<8x8xf32>
    %15 = arith.mulf %5, %6 : vector<8x8xf32>
    %cst_5 = arith.constant dense<0.000000e+00> : vector<8xf32>
    %16 = vector.multi_reduction <add>, %15, %cst_5 [0] : vector<8x8xf32> to vector<8xf32>
    %17 = vector.shape_cast %16 : vector<8xf32> to vector<1x8xf32>
    %18 = arith.mulf %11, %11 : vector<1x8xf32>
    %cst_6 = arith.constant 1.000000e+00 : f32
    %19 = vector.broadcast %cst_6 : f32 to vector<1x8xf32>
    %20 = arith.subf %19, %18 : vector<1x8xf32>
    %21 = arith.mulf %20, %17 : vector<1x8xf32>
    %cst_7 = arith.constant 1.000000e+00 : f32
    %22 = vector.broadcast %cst_7 : f32 to vector<1x8xf32>
    %23 = arith.addf %22, %21 : vector<1x8xf32>
    %24 = math.absf %23 : vector<1x8xf32>
    %25 = math.log %24 : vector<1x8xf32>
    %26 = arith.addf %1, %25 : vector<1x8xf32>
    %c1 = arith.constant 1 : index
    %c0_8 = arith.constant 0 : index
    %c0_9 = arith.constant 0 : index
    %27 = vector.load %arg2[%c1, %c0_8, %c0_9] : memref<4x17x8xf32, #tpu.memory_space<vmem>>, vector<1x17x8xf32>
    %28 = vector.shape_cast %27 : vector<1x17x8xf32> to vector<17x8xf32>
    %29 = vector.extract_strided_slice %28 {offsets = [0, 0], sizes = [1, 8], strides = [1, 1]} : vector<17x8xf32> to vector<1x8xf32>
    %30 = vector.extract_strided_slice %28 {offsets = [1, 0], sizes = [8, 8], strides = [1, 1]} : vector<17x8xf32> to vector<8x8xf32>
    %31 = vector.extract_strided_slice %28 {offsets = [9, 0], sizes = [8, 8], strides = [1, 1]} : vector<17x8xf32> to vector<8x8xf32>
    %32 = arith.mulf %14, %30 : vector<8x8xf32>
    %cst_10 = arith.constant dense<0.000000e+00> : vector<8xf32>
    %33 = vector.multi_reduction <add>, %32, %cst_10 [0] : vector<8x8xf32> to vector<8xf32>
    %34 = vector.shape_cast %33 : vector<8xf32> to vector<1x8xf32>
    %35 = arith.addf %34, %29 : vector<1x8xf32>
    %36 = math.tanh %35 : vector<1x8xf32>
    %37 = vector.broadcast %36 : vector<1x8xf32> to vector<8x8xf32>
    %38 = arith.mulf %31, %37 : vector<8x8xf32>
    %39 = arith.addf %14, %38 : vector<8x8xf32>
    %40 = arith.mulf %30, %31 : vector<8x8xf32>
    %cst_11 = arith.constant dense<0.000000e+00> : vector<8xf32>
    %41 = vector.multi_reduction <add>, %40, %cst_11 [0] : vector<8x8xf32> to vector<8xf32>
    %42 = vector.shape_cast %41 : vector<8xf32> to vector<1x8xf32>
    %43 = arith.mulf %36, %36 : vector<1x8xf32>
    %cst_12 = arith.constant 1.000000e+00 : f32
    %44 = vector.broadcast %cst_12 : f32 to vector<1x8xf32>
    %45 = arith.subf %44, %43 : vector<1x8xf32>
    %46 = arith.mulf %45, %42 : vector<1x8xf32>
    %cst_13 = arith.constant 1.000000e+00 : f32
    %47 = vector.broadcast %cst_13 : f32 to vector<1x8xf32>
    %48 = arith.addf %47, %46 : vector<1x8xf32>
    %49 = math.absf %48 : vector<1x8xf32>
    %50 = math.log %49 : vector<1x8xf32>
    %51 = arith.addf %26, %50 : vector<1x8xf32>
    %c2 = arith.constant 2 : index
    %c0_14 = arith.constant 0 : index
    %c0_15 = arith.constant 0 : index
    %52 = vector.load %arg2[%c2, %c0_14, %c0_15] : memref<4x17x8xf32, #tpu.memory_space<vmem>>, vector<1x17x8xf32>
    %53 = vector.shape_cast %52 : vector<1x17x8xf32> to vector<17x8xf32>
    %54 = vector.extract_strided_slice %53 {offsets = [0, 0], sizes = [1, 8], strides = [1, 1]} : vector<17x8xf32> to vector<1x8xf32>
    %55 = vector.extract_strided_slice %53 {offsets = [1, 0], sizes = [8, 8], strides = [1, 1]} : vector<17x8xf32> to vector<8x8xf32>
    %56 = vector.extract_strided_slice %53 {offsets = [9, 0], sizes = [8, 8], strides = [1, 1]} : vector<17x8xf32> to vector<8x8xf32>
    %57 = arith.mulf %39, %55 : vector<8x8xf32>
    %cst_16 = arith.constant dense<0.000000e+00> : vector<8xf32>
    %58 = vector.multi_reduction <add>, %57, %cst_16 [0] : vector<8x8xf32> to vector<8xf32>
    %59 = vector.shape_cast %58 : vector<8xf32> to vector<1x8xf32>
    %60 = arith.addf %59, %54 : vector<1x8xf32>
    %61 = math.tanh %60 : vector<1x8xf32>
    %62 = vector.broadcast %61 : vector<1x8xf32> to vector<8x8xf32>
    %63 = arith.mulf %56, %62 : vector<8x8xf32>
    %64 = arith.addf %39, %63 : vector<8x8xf32>
    %65 = arith.mulf %55, %56 : vector<8x8xf32>
    %cst_17 = arith.constant dense<0.000000e+00> : vector<8xf32>
    %66 = vector.multi_reduction <add>, %65, %cst_17 [0] : vector<8x8xf32> to vector<8xf32>
    %67 = vector.shape_cast %66 : vector<8xf32> to vector<1x8xf32>
    %68 = arith.mulf %61, %61 : vector<1x8xf32>
    %cst_18 = arith.constant 1.000000e+00 : f32
    %69 = vector.broadcast %cst_18 : f32 to vector<1x8xf32>
    %70 = arith.subf %69, %68 : vector<1x8xf32>
    %71 = arith.mulf %70, %67 : vector<1x8xf32>
    %cst_19 = arith.constant 1.000000e+00 : f32
    %72 = vector.broadcast %cst_19 : f32 to vector<1x8xf32>
    %73 = arith.addf %72, %71 : vector<1x8xf32>
    %74 = math.absf %73 : vector<1x8xf32>
    %75 = math.log %74 : vector<1x8xf32>
    %76 = arith.addf %51, %75 : vector<1x8xf32>
    %c3 = arith.constant 3 : index
    %c0_20 = arith.constant 0 : index
    %c0_21 = arith.constant 0 : index
    %77 = vector.load %arg2[%c3, %c0_20, %c0_21] : memref<4x17x8xf32, #tpu.memory_space<vmem>>, vector<1x17x8xf32>
    %78 = vector.shape_cast %77 : vector<1x17x8xf32> to vector<17x8xf32>
    %79 = vector.extract_strided_slice %78 {offsets = [0, 0], sizes = [1, 8], strides = [1, 1]} : vector<17x8xf32> to vector<1x8xf32>
    %80 = vector.extract_strided_slice %78 {offsets = [1, 0], sizes = [8, 8], strides = [1, 1]} : vector<17x8xf32> to vector<8x8xf32>
    %81 = vector.extract_strided_slice %78 {offsets = [9, 0], sizes = [8, 8], strides = [1, 1]} : vector<17x8xf32> to vector<8x8xf32>
    %82 = arith.mulf %64, %80 : vector<8x8xf32>
    %cst_22 = arith.constant dense<0.000000e+00> : vector<8xf32>
    %83 = vector.multi_reduction <add>, %82, %cst_22 [0] : vector<8x8xf32> to vector<8xf32>
    %84 = vector.shape_cast %83 : vector<8xf32> to vector<1x8xf32>
    %85 = arith.addf %84, %79 : vector<1x8xf32>
    %86 = math.tanh %85 : vector<1x8xf32>
    %87 = vector.broadcast %86 : vector<1x8xf32> to vector<8x8xf32>
    %88 = arith.mulf %81, %87 : vector<8x8xf32>
    %89 = arith.addf %64, %88 : vector<8x8xf32>
    %90 = arith.mulf %80, %81 : vector<8x8xf32>
    %cst_23 = arith.constant dense<0.000000e+00> : vector<8xf32>
    %91 = vector.multi_reduction <add>, %90, %cst_23 [0] : vector<8x8xf32> to vector<8xf32>
    %92 = vector.shape_cast %91 : vector<8xf32> to vector<1x8xf32>
    %93 = arith.mulf %86, %86 : vector<1x8xf32>
    %cst_24 = arith.constant 1.000000e+00 : f32
    %94 = vector.broadcast %cst_24 : f32 to vector<1x8xf32>
    %95 = arith.subf %94, %93 : vector<1x8xf32>
    %96 = arith.mulf %95, %92 : vector<1x8xf32>
    %cst_25 = arith.constant 1.000000e+00 : f32
    %97 = vector.broadcast %cst_25 : f32 to vector<1x8xf32>
    %98 = arith.addf %97, %96 : vector<1x8xf32>
    %99 = math.absf %98 : vector<1x8xf32>
    %100 = math.log %99 : vector<1x8xf32>
    %101 = arith.addf %76, %100 : vector<1x8xf32>
    %c0_26 = arith.constant 0 : index
    %c0_27 = arith.constant 0 : index
    %102 = vector.load %arg3[%c0_26, %c0_27] : memref<9x8xf32, #tpu.memory_space<vmem>>, vector<8x8xf32>
    tpu.vector_store %arg3[%c0_26, %c0_27], %89 {strides = array<i32>} : memref<9x8xf32, #tpu.memory_space<vmem>>, vector<8x8xf32>,
    %c8 = arith.constant 8 : index
    %c0_28 = arith.constant 0 : index
    %103 = vector.load %arg3[%c8, %c0_28] : memref<9x8xf32, #tpu.memory_space<vmem>>, vector<1x8xf32>
    tpu.vector_store %arg3[%c8, %c0_28], %101 {strides = array<i32>} : memref<9x8xf32, #tpu.memory_space<vmem>>, vector<1x8xf32>,
    return
  }
  func.func @transform_0(%arg0: i32) -> (i32, i32) {
    %c0_i32 = arith.constant 0 : i32
    %c0_i32_0 = arith.constant 0 : i32
    return %c0_i32, %arg0 : i32, i32
  }
  func.func @transform_1(%arg0: i32) -> (i32, i32, i32) {
    %c0_i32 = arith.constant 0 : i32
    %c0_i32_0 = arith.constant 0 : i32
    %c0_i32_1 = arith.constant 0 : i32
    return %c0_i32, %c0_i32_0, %arg0 : i32, i32, i32
  }
  func.func @transform_2(%arg0: i32) -> (i32, i32) {
    %c0_i32 = arith.constant 0 : i32
    %c0_i32_0 = arith.constant 0 : i32
    return %c0_i32, %arg0 : i32, i32
  }
}

</mosaic_0001>

<llo_original>
// kernel: tpu_custom_call.1
$region0: #{tpu_custom_call.1}
  #allocation0 [shape = 'u32[]', space=smem, size = 0x4, offset = 0x4, fixed_abs, tag = 'smem constant byte address 0x4 - core index']
  #allocation1 [shape = 'u32[144,128]{1,0:T(1,128)}', space=vmem, size = 0x12000, scoped, tag = 'internal scratch']
  %s0 = inlined_call_operand.vmem [shape: f32[8,8], index: 0, kind: input, shape index: {}]
  %s1 = inlined_call_operand.vmem [shape: f32[4,17,8], index: 1, kind: input, shape index: {}]
  %s2 = inlined_call_operand.vmem [shape: f32[9,8], index: 2, kind: output, shape index: {}]
  %s3 = sld [smem:[#allocation0]]
  $region18: #{tpu_custom_call.1} parent=0
    _
  %s5 = ssub.s32 1, %s3
  %s6 = scalar_select 0, %s5, %s3
  // Predicated region
  $region2: #{tpu_custom_call.1} parent=0 // pred_check
    _
  $region3: #{tpu_custom_call.1} parent=0 // pred_check_branch
    %8 = sbr.rel (0) target = $region5
  $region4: #{tpu_custom_call.1} parent=0 // pred_region
    _
  $region5: #{tpu_custom_call.1} parent=0 // pred_fallthru
    _
  // Predicated region
  $region6: #{tpu_custom_call.1} parent=0 // pred_check
    _
  $region7: #{tpu_custom_call.1} parent=0 // pred_check_branch
    %10 = sbr.rel (0) target = $region9
  $region8: #{tpu_custom_call.1} parent=0 // pred_region
    _
  $region9: #{tpu_custom_call.1} parent=0 // pred_fallthru
    _
  %v11 = vld [vmem:[%s0] sm:$0xff]
  %v12 = vld [vmem:[%s1] sm:$0xff]
  %v13 = vld [vmem:[%s1 + $0x8] sm:$0xff]
  %v14 = vld [vmem:[%s1 + $0x10] sm:$0x1]
  %vm17 = vcmask 1046528
  %v18 = vrot.slane %v12, 1
  %v19 = vrot.slane %v13, 1
  %v20 = vsel %vm17, %v18, %v19
  %v22 = vmul.f32 %v11, %v20
  %vm23 = vcmask 64512
  %v24 = vsel %vm23, %v22, 0.0
  %v25 = vrot.slane %v24, 4
  %v26 = vadd.f32 %v24, %v25
  %v27 = vrot.slane %v26, 2
  %v28 = vadd.f32 %v26, %v27
  %v29 = vrot.slane %v28, 1
  %v30 = vadd.f32 %v28, %v29
  %v31 = vadd.f32 %v30, %v12
  %v32 = vtanh.pop %v31
  %v33 = vlaneseq
  %v34 = vshrl.u32 %v33, 7
  %v35 = vsub.s32 0, %v34
  %v36 = vrot.slane %v32, %v35
  %v37 = vmul.f32 %v13, %v36
  %v38 = vmul.f32 %v14, %v36
  %v41 = vrot.slane %v37, 1
  %v42 = vrot.slane %v38, 1
  %v43 = vsel %vm17, %v41, %v42
  %v45 = vadd.f32 %v11, %v43
  %v46 = vmul.f32 %v12, %v13
  %v47 = vmul.f32 %v13, %v14
  %v50 = vrot.slane %v46, 1
  %v51 = vrot.slane %v47, 1
  %v52 = vsel %vm17, %v50, %v51
  %v54 = vsel %vm23, %v52, 0.0
  %v55 = vrot.slane %v54, 4
  %v56 = vadd.f32 %v54, %v55
  %v57 = vrot.slane %v56, 2
  %v58 = vadd.f32 %v56, %v57
  %v59 = vrot.slane %v58, 1
  %v60 = vadd.f32 %v58, %v59
  %v61 = vmul.f32 %v32, %v32
  %v62 = vsub.f32 1.0, %v61
  %v63 = vmul.f32 %v62, %v60
  %v64 = vadd.f32 %v63, 1.0
  %v65 = vand.u32 2147483647, %v64
  %v66 = vlog2.pop %v65
  %v67 = vmul.f32 %v66, 0.6931472
  %v68 = vadd.f32 %v67, 0.0
  %s69 = scalar_lea.vmem %s1, 24
  %v70 = vld [vmem:[%s69] sm:$0xff]
  %v71 = vld [vmem:[%s69 + $0x8] sm:$0xff]
  %v72 = vld [vmem:[%s69 + $0x10] sm:$0x1]
  %v75 = vrot.slane %v70, 1
  %v76 = vrot.slane %v71, 1
  %v77 = vsel %vm17, %v75, %v76
  %v79 = vmul.f32 %v45, %v77
  %v80 = vsel %vm23, %v79, 0.0
  %v81 = vrot.slane %v80, 4
  %v82 = vadd.f32 %v80, %v81
  %v83 = vrot.slane %v82, 2
  %v84 = vadd.f32 %v82, %v83
  %v85 = vrot.slane %v84, 1
  %v86 = vadd.f32 %v84, %v85
  %v87 = vadd.f32 %v86, %v70
  %v88 = vtanh.pop %v87
  %v89 = vlaneseq
  %v90 = vshrl.u32 %v89, 7
  %v91 = vsub.s32 0, %v90
  %v92 = vrot.slane %v88, %v91
  %v93 = vmul.f32 %v71, %v92
  %v94 = vmul.f32 %v72, %v92
  %v97 = vrot.slane %v93, 1
  %v98 = vrot.slane %v94, 1
  %v99 = vsel %vm17, %v97, %v98
  %v101 = vadd.f32 %v45, %v99
  %v102 = vmul.f32 %v70, %v71
  %v103 = vmul.f32 %v71, %v72
  %v106 = vrot.slane %v102, 1
  %v107 = vrot.slane %v103, 1
  %v108 = vsel %vm17, %v106, %v107
  %v110 = vsel %vm23, %v108, 0.0
  %v111 = vrot.slane %v110, 4
  %v112 = vadd.f32 %v110, %v111
  %v113 = vrot.slane %v112, 2
  %v114 = vadd.f32 %v112, %v113
  %v115 = vrot.slane %v114, 1
  %v116 = vadd.f32 %v114, %v115
  %v117 = vmul.f32 %v88, %v88
  %v118 = vsub.f32 1.0, %v117
  %v119 = vmul.f32 %v118, %v116
  %v120 = vadd.f32 %v119, 1.0
  %v121 = vand.u32 2147483647, %v120
  %v122 = vlog2.pop %v121
  %v123 = vmul.f32 %v122, 0.6931472
  %v124 = vadd.f32 %v68, %v123
  %s125 = scalar_lea.vmem %s1, 48
  %v126 = vld [vmem:[%s125] sm:$0xff]
  %v127 = vld [vmem:[%s125 + $0x8] sm:$0xff]
  %v128 = vld [vmem:[%s125 + $0x10] sm:$0x1]
  %v131 = vrot.slane %v126, 1
  %v132 = vrot.slane %v127, 1
  %v133 = vsel %vm17, %v131, %v132
  %v135 = vmul.f32 %v101, %v133
  %v136 = vsel %vm23, %v135, 0.0
  %v137 = vrot.slane %v136, 4
  %v138 = vadd.f32 %v136, %v137
  %v139 = vrot.slane %v138, 2
  %v140 = vadd.f32 %v138, %v139
  %v141 = vrot.slane %v140, 1
  %v142 = vadd.f32 %v140, %v141
  %v143 = vadd.f32 %v142, %v126
  %v144 = vtanh.pop %v143
  %v145 = vlaneseq
  %v146 = vshrl.u32 %v145, 7
  %v147 = vsub.s32 0, %v146
  %v148 = vrot.slane %v144, %v147
  %v149 = vmul.f32 %v127, %v148
  %v150 = vmul.f32 %v128, %v148
  %v153 = vrot.slane %v149, 1
  %v154 = vrot.slane %v150, 1
  %v155 = vsel %vm17, %v153, %v154
  %v157 = vadd.f32 %v101, %v155
  %v158 = vmul.f32 %v126, %v127
  %v159 = vmul.f32 %v127, %v128
  %v162 = vrot.slane %v158, 1
  %v163 = vrot.slane %v159, 1
  %v164 = vsel %vm17, %v162, %v163
  %v166 = vsel %vm23, %v164, 0.0
  %v167 = vrot.slane %v166, 4
  %v168 = vadd.f32 %v166, %v167
  %v169 = vrot.slane %v168, 2
  %v170 = vadd.f32 %v168, %v169
  %v171 = vrot.slane %v170, 1
  %v172 = vadd.f32 %v170, %v171
  %v173 = vmul.f32 %v144, %v144
  %v174 = vsub.f32 1.0, %v173
  %v175 = vmul.f32 %v174, %v172
  %v176 = vadd.f32 %v175, 1.0
  %v177 = vand.u32 2147483647, %v176
  %v178 = vlog2.pop %v177
  %v179 = vmul.f32 %v178, 0.6931472
  %v180 = vadd.f32 %v124, %v179
  %s181 = scalar_lea.vmem %s1, 72
  %v182 = vld [vmem:[%s181] sm:$0xff]
  %v183 = vld [vmem:[%s181 + $0x8] sm:$0xff]
  %v184 = vld [vmem:[%s181 + $0x10] sm:$0x1]
  %v187 = vrot.slane %v182, 1
  %v188 = vrot.slane %v183, 1
  %v189 = vsel %vm17, %v187, %v188
  %v191 = vmul.f32 %v157, %v189
  %v192 = vsel %vm23, %v191, 0.0
  %v193 = vrot.slane %v192, 4
  %v194 = vadd.f32 %v192, %v193
  %v195 = vrot.slane %v194, 2
  %v196 = vadd.f32 %v194, %v195
  %v197 = vrot.slane %v196, 1
  %v198 = vadd.f32 %v196, %v197
  %v199 = vadd.f32 %v198, %v182
  %v200 = vtanh.pop %v199
  %v201 = vlaneseq
  %v202 = vshrl.u32 %v201, 7
  %v203 = vsub.s32 0, %v202
  %v204 = vrot.slane %v200, %v203
  %v205 = vmul.f32 %v183, %v204
  %v206 = vmul.f32 %v184, %v204
  %v209 = vrot.slane %v205, 1
  %v210 = vrot.slane %v206, 1
  %v211 = vsel %vm17, %v209, %v210
  %v213 = vadd.f32 %v157, %v211
  %v214 = vmul.f32 %v182, %v183
  %v215 = vmul.f32 %v183, %v184
  %v218 = vrot.slane %v214, 1
  %v219 = vrot.slane %v215, 1
  %v220 = vsel %vm17, %v218, %v219
  %v222 = vsel %vm23, %v220, 0.0
  %v223 = vrot.slane %v222, 4
  %v224 = vadd.f32 %v222, %v223
  %v225 = vrot.slane %v224, 2
  %v226 = vadd.f32 %v224, %v225
  %v227 = vrot.slane %v226, 1
  %v228 = vadd.f32 %v226, %v227
  %v229 = vmul.f32 %v200, %v200
  %v230 = vsub.f32 1.0, %v229
  %v231 = vmul.f32 %v230, %v228
  %v232 = vadd.f32 %v231, 1.0
  %v233 = vand.u32 2147483647, %v232
  %v234 = vlog2.pop %v233
  %v235 = vmul.f32 %v234, 0.6931472
  %v236 = vadd.f32 %v180, %v235
  %237 = vst.msk [vmem:[%s2] sm:$0xff] %vm23, %v213
  %vm238 = vcmask 57344
  %239 = vst.msk [vmem:[%s2 + $0x8] sm:$0x1] %vm238, %v236
  // Predicated region
  $region10: #{tpu_custom_call.1} parent=0 // pred_check
    _
  $region11: #{tpu_custom_call.1} parent=0 // pred_check_branch
    %241 = sbr.rel (0) target = $region13
  $region12: #{tpu_custom_call.1} parent=0 // pred_region
    _
  $region13: #{tpu_custom_call.1} parent=0 // pred_fallthru
    _
  // Predicated region
  $region14: #{tpu_custom_call.1} parent=0 // pred_check
    _
  $region15: #{tpu_custom_call.1} parent=0 // pred_check_branch
    %243 = sbr.rel (0) target = $region17
  $region16: #{tpu_custom_call.1} parent=0 // pred_region
    _
  $region17: #{tpu_custom_call.1} parent=0 // pred_fallthru
    _

</llo_original>
